<compile_context>
chip_gen: v6e
topology: v6e:2x2x1
jax: 0.10.0
libtpu: 0.0.40
codegen_flags: <defaults>
</compile_context>

<pallas_src>
import functools

import jax
import jax.numpy as jnp
from jax.experimental import pallas as pl
from jax.experimental.pallas import tpu as pltpu


def _round_up(x, m):
    return (x + m - 1) // m * m


def swiglu_kernel(x_ref, wgu_ref, wd_ref, o_ref, acc_ref, *, ti):
    j = pl.program_id(1)

    @pl.when(j == 0)
    def _():
        acc_ref[...] = jnp.zeros_like(acc_ref)

    x = x_ref[...]                                                      # (tm, H) bf16

    # Fused gate/up projection: one MXU matmul against [gate_j | up_j].
    gu = jnp.dot(x, wgu_ref[...], preferred_element_type=jnp.float32)   # (tm, 2*ti) f32
    gate = gu[:, :ti]
    up = gu[:, ti:]

    # SiLU(gate) * up in fp32 (sigmoid goes to the EUP); single cast to bf16
    # feeding the MXU for down_proj.
    gated = (gate * jax.nn.sigmoid(gate) * up).astype(jnp.bfloat16)     # (tm, ti)

    # Partial down_proj for this I-tile, fp32 accumulation in VMEM scratch.
    acc_ref[...] += jnp.dot(gated, wd_ref[...], preferred_element_type=jnp.float32)

    @pl.when(j == pl.num_programs(1) - 1)
    def _():
        o_ref[...] = acc_ref[...].astype(o_ref.dtype)


def prepare_swiglu_weights(gate_w, up_w, down_w, *, ti=512):
    """One-time weight prep (hoisted out of the per-call path).

    gate_w, up_w : [I, H]  (PyTorch nn.Linear layout [out, in])
    down_w       : [H, I]

    Returns (wgu, wd, ti_eff):
      wgu : [H, nI * 2 * ti_eff]  gate/up column-tiles interleaved per ti block,
            so fused-RHS block j == [gate_tile_j | up_tile_j]
      wd  : [I_pad, H]            down_proj weight, row-tiled by ti
    """
    I, H = gate_w.shape
    ti_eff = min(ti, I)
    if ti_eff >= 128:
        ti_eff = (ti_eff // 128) * 128        # keep the gate/up split lane-aligned
    I_pad = _round_up(I, ti_eff)
    nI = I_pad // ti_eff

    wg = gate_w.T.astype(jnp.bfloat16)        # [H, I]
    wu = up_w.T.astype(jnp.bfloat16)          # [H, I]
    wd = down_w.T.astype(jnp.bfloat16)        # [I, H]
    if I_pad != I:
        # Zero-padding I is exact: silu(0) * 0 = 0 and the padded Wd rows are 0.
        wg = jnp.pad(wg, ((0, 0), (0, I_pad - I)))
        wu = jnp.pad(wu, ((0, 0), (0, I_pad - I)))
        wd = jnp.pad(wd, ((0, I_pad - I), (0, 0)))

    wgu = jnp.stack(
        [wg.reshape(H, nI, ti_eff), wu.reshape(H, nI, ti_eff)], axis=2
    ).reshape(H, nI * 2 * ti_eff)
    return wgu, wd, ti_eff


def _vmem_footprint(tm, H, ti):
    bf16 = 2
    return (
        2 * tm * H * bf16          # x tile, double-buffered
        + 2 * tm * H * bf16        # out tile, double-buffered
        + 2 * H * (2 * ti) * bf16  # fused gate/up weight tile, double-buffered
        + 2 * ti * H * bf16        # down weight tile, double-buffered
        + tm * H * 4               # fp32 accumulator scratch
    )


@functools.partial(jax.jit, static_argnames=("ti", "tm"))
def swiglu(x, wgu, wd, *, ti, tm=512):
    """x: [B, S, H] bf16; wgu/wd from prepare_swiglu_weights(). Returns [B, S, H] bf16."""
    B, S, H = x.shape
    M = B * S
    I_pad = wd.shape[0]
    nI = I_pad // ti

    # bf16 sublane packing prefers multiples of 16; shrink tm if the row tile,
    # streamed weight tiles and fp32 accumulator would exceed the VMEM budget
    # (48 MiB target leaves headroom on v7x's 64 MiB per-TC VMEM).
    tm_eff = min(tm, _round_up(M, 16))
    while tm_eff >= 128 and _vmem_footprint(tm_eff, H, ti) > 48 * 1024 * 1024:
        tm_eff //= 2
    M_pad = _round_up(M, tm_eff)

    x2d = x.reshape(M, H)
    if M_pad != M:
        x2d = jnp.pad(x2d, ((0, M_pad - M), (0, 0)))

    grid = (M_pad // tm_eff, nI)

    vmem_bytes = _vmem_footprint(tm_eff, H, ti)
    # Cap at 64 MiB so the same tiling compiles on v7x (64 MiB VMEM per TC).
    vmem_limit = min(64 * 1024 * 1024, max(16 * 1024 * 1024, int(vmem_bytes * 3 // 2)))

    bf16 = 2
    cost = pl.CostEstimate(
        flops=6 * M_pad * H * I_pad,                     # 3 matmuls of 2*M*H*I
        transcendentals=M_pad * I_pad,                   # sigmoid
        bytes_accessed=(x2d.size + M_pad * H) * bf16
        + (wgu.size + wd.size) * bf16 * (M_pad // tm_eff),
    )

    out = pl.pallas_call(
        functools.partial(swiglu_kernel, ti=ti),
        out_shape=jax.ShapeDtypeStruct((M_pad, H), x.dtype),
        grid_spec=pltpu.PrefetchScalarGridSpec(
            num_scalar_prefetch=0,
            grid=grid,
            in_specs=[
                pl.BlockSpec((tm_eff, H), lambda i, j: (i, 0)),    # x row tile
                pl.BlockSpec((H, 2 * ti), lambda i, j: (0, j)),    # [gate_j | up_j]
                pl.BlockSpec((ti, H), lambda i, j: (j, 0)),        # Wd row tile
            ],
            out_specs=pl.BlockSpec((tm_eff, H), lambda i, j: (i, 0)),
            scratch_shapes=[pltpu.VMEM((tm_eff, H), jnp.float32)],
        ),
        compiler_params=pltpu.CompilerParams(
            dimension_semantics=("parallel", "arbitrary"),
            vmem_limit_bytes=vmem_limit,
        ),
        cost_estimate=cost,
    )(x2d, wgu, wd)

    return out[:M].reshape(B, S, H)


def swiglu_ref(x, gate_w, up_w, down_w):
    """Plain-JAX reference matching the PyTorch forward (bf16 linears)."""
    gate = jnp.dot(x, gate_w.T, preferred_element_type=jnp.float32).astype(jnp.bfloat16)
    up = jnp.dot(x, up_w.T, preferred_element_type=jnp.float32).astype(jnp.bfloat16)
    g = gate.astype(jnp.float32)
    gated = (g * jax.nn.sigmoid(g) * up.astype(jnp.float32)).astype(jnp.bfloat16)
    out = jnp.dot(gated, down_w.T, preferred_element_type=jnp.float32)
    return out.astype(jnp.bfloat16)


if __name__ == "__main__":
    B, S, H = 2, 8, 32
    I = 2 * H

    key = jax.random.PRNGKey(0)
    kx, kg, ku, kd = jax.random.split(key, 4)

    x = jax.random.normal(kx, (B, S, H), dtype=jnp.float32).astype(jnp.bfloat16)
    # nn.Linear weight layout: [out_features, in_features]
    gate_w = (jax.random.normal(kg, (I, H), dtype=jnp.float32) * 0.05).astype(jnp.bfloat16)
    up_w = (jax.random.normal(ku, (I, H), dtype=jnp.float32) * 0.05).astype(jnp.bfloat16)
    down_w = (jax.random.normal(kd, (H, I), dtype=jnp.float32) * 0.05).astype(jnp.bfloat16)

    # One-time weight prep (transpose + gate/up fusion), outside the jitted call.
    wgu, wd, ti = prepare_swiglu_weights(gate_w, up_w, down_w, ti=512)
    wgu, wd = jax.block_until_ready((wgu, wd))

    out = swiglu(x, wgu, wd, ti=ti, tm=512)
    out = jax.block_until_ready(out)

    ref = swiglu_ref(x, gate_w, up_w, down_w)
    assert out.shape == (B, S, H) and out.dtype == jnp.bfloat16
    err = jnp.max(jnp.abs(out.astype(jnp.float32) - ref.astype(jnp.float32)))
    assert float(err) < 5e-2, f"max abs error {float(err)}"

    print("KERNEL_OK")
</pallas_src>

<mosaic_0001>
module attributes {stable_mosaic.version = 11 : i64} {
  func.func @swiglu_kernel(%arg0: i32, %arg1: i32, %arg2: memref<16x32xbf16, #tpu.memory_space<vmem>>, %arg3: memref<32x128xbf16, #tpu.memory_space<vmem>>, %arg4: memref<64x32xbf16, #tpu.memory_space<vmem>>, %arg5: memref<16x32xbf16, #tpu.memory_space<vmem>>, %arg6: memref<16x32xf32, #tpu.memory_space<vmem>>) attributes {dimension_semantics = [#tpu.dimension_semantics<parallel>, #tpu.dimension_semantics<arbitrary>], iteration_bounds = array<i64: 1, 1>, scalar_prefetch = 0 : i64, scratch_operands = 1 : i64, tpu.core_type = #tpu.core_type<tc>, window_params = [{transform_indices = @transform_0, window_bounds = array<i64: 16, 32>}, {transform_indices = @transform_1, window_bounds = array<i64: 32, 128>}, {transform_indices = @transform_2, window_bounds = array<i64: 64, 32>}, {transform_indices = @transform_3, window_bounds = array<i64: 16, 32>}]} {
    %c0_i32 = arith.constant 0 : i32
    %0 = arith.cmpi eq, %arg1, %c0_i32 : i32
    %1 = arith.extui %0 : i1 to i32
    %c0_i32_0 = arith.constant 0 : i32
    %2 = arith.cmpi ne, %1, %c0_i32_0 : i32
    scf.if %2 {
      %cst_14 = arith.constant 0.000000e+00 : f32
      %24 = vector.broadcast %cst_14 : f32 to vector<16x32xf32>
      %c0_15 = arith.constant 0 : index
      %c0_16 = arith.constant 0 : index
      %25 = vector.load %arg6[%c0_15, %c0_16] : memref<16x32xf32, #tpu.memory_space<vmem>>, vector<16x32xf32>
      tpu.vector_store %arg6[%c0_15, %c0_16], %24 {strides = array<i32>} : memref<16x32xf32, #tpu.memory_space<vmem>>, vector<16x32xf32>,
    } else {
    }
    %c0 = arith.constant 0 : index
    %c0_1 = arith.constant 0 : index
    %3 = vector.load %arg2[%c0, %c0_1] : memref<16x32xbf16, #tpu.memory_space<vmem>>, vector<16x32xbf16>
    %c0_2 = arith.constant 0 : index
    %c0_3 = arith.constant 0 : index
    %4 = vector.load %arg3[%c0_2, %c0_3] : memref<32x128xbf16, #tpu.memory_space<vmem>>, vector<32x128xbf16>
    %cst = arith.constant dense<0.000000e+00> : vector<16x128xf32>
    %5 = tpu.matmul %3, %4, %cst {dimension_numbers = #tpu.dot_dimension_numbers<[1], [0], [0], [1], [0, 0, 1, 1], [], []>} : vector<16x32xbf16>, vector<32x128xbf16>, vector<16x128xf32> -> vector<16x128xf32>
    %6 = vector.extract_strided_slice %5 {offsets = [0, 0], sizes = [16, 64], strides = [1, 1]} : vector<16x128xf32> to vector<16x64xf32>
    %7 = vector.extract_strided_slice %5 {offsets = [0, 64], sizes = [16, 64], strides = [1, 1]} : vector<16x128xf32> to vector<16x64xf32>
    %8 = arith.negf %6 : vector<16x64xf32>
    %9 = math.exp %8 : vector<16x64xf32>
    %cst_4 = arith.constant 1.000000e+00 : f32
    %10 = vector.broadcast %cst_4 : f32 to vector<16x64xf32>
    %11 = arith.addf %10, %9 : vector<16x64xf32>
    %12 = arith.divf %10, %11 : vector<16x64xf32>
    %13 = arith.mulf %6, %12 : vector<16x64xf32>
    %14 = arith.mulf %13, %7 : vector<16x64xf32>
    %15 = arith.truncf %14 : vector<16x64xf32> to vector<16x64xbf16>
    %c0_5 = arith.constant 0 : index
    %c0_6 = arith.constant 0 : index
    %16 = vector.load %arg6[%c0_5, %c0_6] : memref<16x32xf32, #tpu.memory_space<vmem>>, vector<16x32xf32>
    %c0_7 = arith.constant 0 : index
    %c0_8 = arith.constant 0 : index
    %17 = vector.load %arg4[%c0_7, %c0_8] : memref<64x32xbf16, #tpu.memory_space<vmem>>, vector<64x32xbf16>
    %cst_9 = arith.constant dense<0.000000e+00> : vector<16x32xf32>
    %18 = tpu.matmul %15, %17, %cst_9 {dimension_numbers = #tpu.dot_dimension_numbers<[1], [0], [0], [1], [0, 0, 1, 1], [], []>} : vector<16x64xbf16>, vector<64x32xbf16>, vector<16x32xf32> -> vector<16x32xf32>
    %19 = arith.addf %16, %18 : vector<16x32xf32>
    %c0_10 = arith.constant 0 : index
    %c0_11 = arith.constant 0 : index
    %20 = vector.load %arg6[%c0_10, %c0_11] : memref<16x32xf32, #tpu.memory_space<vmem>>, vector<16x32xf32>
    tpu.vector_store %arg6[%c0_10, %c0_11], %19 {strides = array<i32>} : memref<16x32xf32, #tpu.memory_space<vmem>>, vector<16x32xf32>,
    %c0_i32_12 = arith.constant 0 : i32
    %21 = arith.cmpi eq, %arg1, %c0_i32_12 : i32
    %22 = arith.extui %21 : i1 to i32
    %c0_i32_13 = arith.constant 0 : i32
    %23 = arith.cmpi ne, %22, %c0_i32_13 : i32
    scf.if %23 {
      %c0_14 = arith.constant 0 : index
      %c0_15 = arith.constant 0 : index
      %24 = vector.load %arg6[%c0_14, %c0_15] : memref<16x32xf32, #tpu.memory_space<vmem>>, vector<16x32xf32>
      %25 = arith.truncf %24 : vector<16x32xf32> to vector<16x32xbf16>
      %c0_16 = arith.constant 0 : index
      %c0_17 = arith.constant 0 : index
      %26 = vector.load %arg5[%c0_16, %c0_17] : memref<16x32xbf16, #tpu.memory_space<vmem>>, vector<16x32xbf16>
      tpu.vector_store %arg5[%c0_16, %c0_17], %25 {strides = array<i32>} : memref<16x32xbf16, #tpu.memory_space<vmem>>, vector<16x32xbf16>,
    } else {
    }
    return
  }
  func.func @transform_0(%arg0: i32, %arg1: i32) -> (i32, i32) {
    %c0_i32 = arith.constant 0 : i32
    %c0_i32_0 = arith.constant 0 : i32
    return %arg0, %c0_i32 : i32, i32
  }
  func.func @transform_1(%arg0: i32, %arg1: i32) -> (i32, i32) {
    %c0_i32 = arith.constant 0 : i32
    %c0_i32_0 = arith.constant 0 : i32
    return %c0_i32, %arg1 : i32, i32
  }
  func.func @transform_2(%arg0: i32, %arg1: i32) -> (i32, i32) {
    %c0_i32 = arith.constant 0 : i32
    %c0_i32_0 = arith.constant 0 : i32
    return %arg1, %c0_i32 : i32, i32
  }
  func.func @transform_3(%arg0: i32, %arg1: i32) -> (i32, i32) {
    %c0_i32 = arith.constant 0 : i32
    %c0_i32_0 = arith.constant 0 : i32
    return %arg0, %c0_i32 : i32, i32
  }
}

</mosaic_0001>

<llo_original>
// kernel: swiglu.1
$region0: #{swiglu.1}
  #allocation0 [shape = 'u32[]', space=smem, size = 0x4, offset = 0x4, fixed_abs, tag = 'smem constant byte address 0x4 - core index']
  #allocation1 [shape = 'u32[144,128]{1,0:T(1,128)}', space=vmem, size = 0x12000, scoped, tag = 'internal scratch']
  #allocation2 [shape = 'f32[16,32]{1,0:T(8,128)}', space=vmem, size = 0x2000, scoped, tag = 'scratch operand']
  %s0 = inlined_call_operand.vmem [shape: bf16[16,32], index: 0, kind: input, shape index: {}]
  %s1 = inlined_call_operand.vmem [shape: bf16[32,128], index: 1, kind: input, shape index: {}]
  %s2 = inlined_call_operand.vmem [shape: bf16[64,32], index: 2, kind: input, shape index: {}]
  %s3 = inlined_call_operand.hbm [shape: bf16[16,32], index: 3, kind: output, shape index: {}]
  %s4 = sld [smem:[#allocation0]]
  $region30: #{swiglu.1} parent=0
    _
  %s6 = ssub.s32 1, %s4
  %s7 = scalar_select 0, %s6, %s4
  $region1: #{swiglu.1} parent=0
    #allocation3 [shape = 'u8[4096]{0}', space=vmem, size = 0x1000, scoped, tag = 'output window, operand 0, single buffered']
    #allocation4 [shape = 's32[1]{0}', space=sflag, size = 0x4, scoped, tag = 'scoped memory for swiglu.1']
    %8 = vsyncpa [#allocation4], 0
    // Predicated region
    $region2: #{swiglu.1} parent=1 // pred_check
      _
    $region3: #{swiglu.1} parent=1 // pred_check_branch
      %10 = sbr.rel (0) target = $region5
    $region4: #{swiglu.1} parent=1 // pred_region
      _
    $region5: #{swiglu.1} parent=1 // pred_fallthru
      _
    // Predicated region
    $region6: #{swiglu.1} parent=1 // pred_check
      _
    $region7: #{swiglu.1} parent=1 // pred_check_branch
      %12 = sbr.rel (0) target = $region9
    $region8: #{swiglu.1} parent=1 // pred_region
      _
    $region9: #{swiglu.1} parent=1 // pred_fallthru
      _
    // Predicated region
    $region10: #{swiglu.1} parent=1 // pred_check
      _
    $region11: #{swiglu.1} parent=1 // pred_check_branch
      %14 = sbr.rel (0) target = $region13
    $region12: #{swiglu.1} parent=1 // pred_region
      _
    $region13: #{swiglu.1} parent=1 // pred_fallthru
      _
    %p16 = scmp.eq.s32.totalorder 0, 0
    // Predicated region
    $region14: #{swiglu.1} parent=1 // pred_check
      %p17 = pneg %p16
    $region15: #{swiglu.1} parent=1 // pred_check_branch
      %19 = sbr.rel (%p17) target = $region17
    $region16: #{swiglu.1} parent=1 // pred_region
      %vm20 = vcmask 261120
      %21 = vst.msk [vmem:[#allocation2] sm:$0xff] %vm20, 0.0
      %22 = vst.msk [vmem:[#allocation2 + $0x8] sm:$0xff] %vm20, 0.0
    $region17: #{swiglu.1} parent=1 // pred_fallthru
      _
    %v23 = vld [vmem:[%s0] sm:$0xf]
    %v24 = vld [vmem:[%s0 + $0x4] sm:$0xf]
    %v25 = vld [vmem:[%s1] sm:$0xf]
    %v26 = vld [vmem:[%s1 + $0x4] sm:$0xf]
    %v27 = vld [vmem:[%s1 + $0x8] sm:$0xf]
    %v28 = vld [vmem:[%s1 + $0xc] sm:$0xf]
    %v31 = vunpack.c.l.b16 %v23
    %v32 = vunpack.c.l.b16 %v24
    %v33 = vpack.c.b16 %v32, %v31
    %v38 = vunpack.c.l.b16 %v25
    %v39 = vunpack.c.l.b16 %v26
    %v40 = vunpack.c.l.b16 %v27
    %v41 = vunpack.c.l.b16 %v28
    %v42 = vpack.c.b16 %v39, %v38
    %v43 = vpack.c.b16 %v41, %v40
    %vm46 = vcmask 261120
    %v48 = vsel %vm46, %v33, 0
    %50 = vmatprep.subr.bf16.mxu0 0
    %51 = vmatpush1.bf16.msra.mxu0 0
    %52 = vmatprep.subr.bf16.mxu0 0
    %53 = vmatpush1.bf16.msra.mxu0 0
    %54 = vmatprep.subr.bf16.mxu0 0
    %55 = vmatpush1.bf16.msra.mxu0 0
    %56 = vmatprep.subr.bf16.mxu0 0
    %57 = vmatpush1.bf16.msra.mxu0 0
    %58 = vmatprep.subr.bf16.mxu0 0
    %59 = vmatpush1.bf16.msra.mxu0 0
    %60 = vmatprep.subr.bf16.mxu0 0
    %61 = vmatpush1.bf16.msra.mxu0 0
    %62 = vmatprep.subr.bf16.mxu0 0
    %63 = vmatpush1.bf16.msra.mxu0 %v43
    %64 = vmatprep.subr.bf16.mxu0 0
    %65 = vmatpush1.bf16.msra.mxu0 %v42
    %66 = vmatprep.subr.bf16.mxu0 0
    %67 = vmatpush2.bf16.msra.mxu0 0
    %68 = vmatprep.subr.bf16.mxu0 0
    %69 = vmatpush2.bf16.msra.mxu0 0
    %70 = vmatprep.subr.bf16.mxu0 0
    %71 = vmatpush2.bf16.msra.mxu0 0
    %72 = vmatprep.subr.bf16.mxu0 0
    %73 = vmatpush2.bf16.msra.mxu0 0
    %74 = vmatprep.subr.bf16.mxu0 0
    %75 = vmatpush2.bf16.msra.mxu0 0
    %76 = vmatprep.subr.bf16.mxu0 0
    %77 = vmatpush2.bf16.msra.mxu0 0
    %78 = vmatprep.subr.bf16.mxu0 0
    %79 = vmatpush2.bf16.msra.mxu0 0
    %80 = vmatprep.subr.bf16.mxu0 0
    %81 = vmatpush2.bf16.msra.mxu0 0
    %82 = vmatprep.mubr.bf16.mxu0 0
    %83 = vmatmul.mubr.bf16.gmra.mxu0 %v48
    %v84 = vpop.f32.mrf.mxu0
    %v85 = vadd.f32 0.0, %v84
    %v86 = vpop.f32.mrf.mxu0
    %v87 = vpop.f32.mrf.mxu0
    %v88 = vadd.f32 0.0, %v87
    %v89 = vpop.f32.mrf.mxu0
    %90 = vdwg.mxu0
    %v91 = vxor.u32 %v85, 2147483648
    %v92 = vxor.u32 %v88, 2147483648
    %v93 = vmul.f32 %v91, 1.442695
    %v94 = vpow.pop %v93
    %v95 = vmul.f32 %v92, 1.442695
    %v96 = vpow.pop %v95
    %v97 = vadd.f32 %v94, 1.0
    %v98 = vadd.f32 %v96, 1.0
    %v99 = vrcp.pop %v97
    %v100 = vmul.f32 1.0, %v99
    %v101 = vrcp.pop %v98
    %v102 = vmul.f32 1.0, %v101
    %v103 = vmul.f32 %v85, %v100
    %v104 = vmul.f32 %v88, %v102
    %107 = vrot.lane.b32.xlu0 %v85, 64
    %v108 = vpop.permute.xlu0 %107
    %109 = vrot.lane.b32.xlu0 %v88, 64
    %v110 = vpop.permute.xlu0 %109
    %v113 = vmul.f32 %v103, %v108
    %v114 = vmul.f32 %v104, %v110
    %v115 = vpack.c.bf16 %v114, %v113
    %v116 = vld [vmem:[#allocation2] sm:$0xff]
    %v117 = vld [vmem:[#allocation2 + $0x8] sm:$0xff]
    %v118 = vld [vmem:[%s2] sm:$0xf]
    %v119 = vld [vmem:[%s2 + $0x4] sm:$0xf]
    %v120 = vld [vmem:[%s2 + $0x8] sm:$0xf]
    %v121 = vld [vmem:[%s2 + $0xc] sm:$0xf]
    %v122 = vld [vmem:[%s2 + $0x10] sm:$0xf]
    %v123 = vld [vmem:[%s2 + $0x14] sm:$0xf]
    %v124 = vld [vmem:[%s2 + $0x18] sm:$0xf]
    %v125 = vld [vmem:[%s2 + $0x1c] sm:$0xf]
    %v134 = vunpack.c.l.b16 %v118
    %v135 = vunpack.c.l.b16 %v119
    %v136 = vunpack.c.l.b16 %v120
    %v137 = vunpack.c.l.b16 %v121
    %v138 = vunpack.c.l.b16 %v122
    %v139 = vunpack.c.l.b16 %v123
    %v140 = vunpack.c.l.b16 %v124
    %v141 = vunpack.c.l.b16 %v125
    %v142 = vpack.c.b16 %v135, %v134
    %v143 = vpack.c.b16 %v137, %v136
    %v144 = vpack.c.b16 %v139, %v138
    %v145 = vpack.c.b16 %v141, %v140
    %vm150 = vcmask 523264
    %v152 = vsel %vm150, %v115, 0
    %154 = vmatprep.subr.bf16.mxu0 0
    %155 = vmatpush1.bf16.msra.mxu0 0
    %156 = vmatprep.subr.bf16.mxu0 0
    %157 = vmatpush1.bf16.msra.mxu0 0
    %158 = vmatprep.subr.bf16.mxu0 0
    %159 = vmatpush1.bf16.msra.mxu0 0
    %160 = vmatprep.subr.bf16.mxu0 0
    %161 = vmatpush1.bf16.msra.mxu0 0
    %162 = vmatprep.subr.bf16.mxu0 0
    %163 = vmatpush1.bf16.msra.mxu0 %v145
    %164 = vmatprep.subr.bf16.mxu0 0
    %165 = vmatpush1.bf16.msra.mxu0 %v144
    %166 = vmatprep.subr.bf16.mxu0 0
    %167 = vmatpush1.bf16.msra.mxu0 %v143
    %168 = vmatprep.subr.bf16.mxu0 0
    %169 = vmatpush1.bf16.msra.mxu0 %v142
    %170 = vmatprep.subr.bf16.mxu0 0
    %171 = vmatpush2.bf16.msra.mxu0 0
    %172 = vmatprep.subr.bf16.mxu0 0
    %173 = vmatpush2.bf16.msra.mxu0 0
    %174 = vmatprep.subr.bf16.mxu0 0
    %175 = vmatpush2.bf16.msra.mxu0 0
    %176 = vmatprep.subr.bf16.mxu0 0
    %177 = vmatpush2.bf16.msra.mxu0 0
    %178 = vmatprep.subr.bf16.mxu0 0
    %179 = vmatpush2.bf16.msra.mxu0 0
    %180 = vmatprep.subr.bf16.mxu0 0
    %181 = vmatpush2.bf16.msra.mxu0 0
    %182 = vmatprep.subr.bf16.mxu0 0
    %183 = vmatpush2.bf16.msra.mxu0 0
    %184 = vmatprep.subr.bf16.mxu0 0
    %185 = vmatpush2.bf16.msra.mxu0 0
    %186 = vmatprep.mubr.bf16.mxu0 0
    %187 = vmatmul.mubr.bf16.gmra.mxu0 %v152
    %v188 = vpop.f32.mrf.mxu0
    %v189 = vadd.f32 0.0, %v188
    %v190 = vpop.f32.mrf.mxu0
    %v191 = vpop.f32.mrf.mxu0
    %v192 = vadd.f32 0.0, %v191
    %v193 = vpop.f32.mrf.mxu0
    %194 = vdwg.mxu0
    %v195 = vadd.f32 %v116, %v189
    %v196 = vadd.f32 %v117, %v192
    %197 = vst.msk [vmem:[#allocation2] sm:$0xff] %vm46, %v195
    %198 = vst.msk [vmem:[#allocation2 + $0x8] sm:$0xff] %vm46, %v196
    // Predicated region
    $region18: #{swiglu.1} parent=1 // pred_check
      %p199 = pneg %p16
    $region19: #{swiglu.1} parent=1 // pred_check_branch
      %201 = sbr.rel (%p199) target = $region21
    $region20: #{swiglu.1} parent=1 // pred_region
      %v202 = vld [vmem:[#allocation2] sm:$0xff]
      %v203 = vld [vmem:[#allocation2 + $0x8] sm:$0xff]
      %v204 = vpack.c.bf16 %v203, %v202
      %v206 = vunpack.c.l.b16 %v204
      %v207 = vunpack.c.h.b16 %v204
      %v208 = vpack.c.b16 %v206, %v206
      %v209 = vpack.c.b16 %v207, %v207
      %vm212 = vcmask 257024
      %213 = vst.msk [vmem:[#allocation3] sm:$0xf] %vm212, %v208
      %214 = vst.msk [vmem:[#allocation3 + $0x4] sm:$0xf] %vm212, %v209
    $region21: #{swiglu.1} parent=1 // pred_fallthru
      _
    // Predicated region
    $region22: #{swiglu.1} parent=1 // pred_check
      _
    $region23: #{swiglu.1} parent=1 // pred_check_branch
      %216 = sbr.rel (0) target = $region25
    $region24: #{swiglu.1} parent=1 // pred_region
      %s218 = ssub.s32 128, 128
      %219 = vsyncadd [#allocation4], %s218
      %s220 = sshll.u32 [#allocation3], 4
      %s221 = int_to_ptr.vmem [resolvable:$true] %s220
      %226 = dma.vmem_to_hbm [thread:$0]  %s221, 128, %s3, [#allocation4], 64, 64, 4
    $region25: #{swiglu.1} parent=1 // pred_fallthru
      _
    // Predicated region
    $region26: #{swiglu.1} parent=1 // pred_check
      _
    $region27: #{swiglu.1} parent=1 // pred_check_branch
      %228 = sbr.rel (0) target = $region29
    $region28: #{swiglu.1} parent=1 // pred_region
      %229 = dma.done [#allocation4], 128
    $region29: #{swiglu.1} parent=1 // pred_fallthru
      _
    %230 = vsyncpa [#allocation4], 1

</llo_original>
